<compile_context>
chip_gen: v7x
topology: tpu7x:2x2x1
jax: 0.10.0
libtpu: 0.0.40
codegen_flags: <defaults>
</compile_context>

<pallas_src>
import functools

import jax
import jax.numpy as jnp
from jax.experimental import pallas as pl
from jax.experimental.pallas import tpu as pltpu


def _round_up(n: int, m: int) -> int:
    return ((n + m - 1) // m) * m


def _mlp_kernel(x_ref, *refs):
    """Full FCN (MLP) forward for one batch tile, transposed layout, in VMEM.

    refs = (w0, b0, w1, b1, ..., wL, bL, out_ref)
      x_ref : (n_input, block_b)   -- batch on lanes
      wi    : (dout_i, din_i)      -- torch.nn.Linear weight layout
      bi    : (dout_i, 1)
      out   : (n_output, block_b)
    tanh after every linear except the last (matches the nn.Sequential in FCN).
    """
    out_ref = refs[-1]
    param_refs = refs[:-1]
    n_linear = len(param_refs) // 2

    x = x_ref[...].astype(jnp.float32)                      # (n_input, bb)

    # Layer 0: n_input is tiny (e.g. 2 for a PINN), so a K=2 MXU pass is
    # degenerate. Do it with a couple of lane-dense VPU broadcast-FMAs instead,
    # keeping the MXU/vex slot free.
    w0 = param_refs[0][...].astype(jnp.float32)              # (h0, n_input)
    b0 = param_refs[1][...].astype(jnp.float32)              # (h0, 1)
    n_input = x.shape[0]
    h = w0[:, 0:1] * x[0:1, :]
    for k in range(1, n_input):
        h = h + w0[:, k : k + 1] * x[k : k + 1, :]
    h = h + b0
    if n_linear > 1:
        h = jnp.tanh(h)

    # Remaining layers on the MXU: (dout, din) @ (din, block_b); block_b is the
    # large (lane-dense) dimension streamed through the MXU.
    for i in range(1, n_linear):
        w = param_refs[2 * i][...].astype(jnp.float32)       # (dout, din)
        b = param_refs[2 * i + 1][...].astype(jnp.float32)   # (dout, 1)
        h = jnp.dot(w, h, preferred_element_type=jnp.float32) + b
        if i < n_linear - 1:
            h = jnp.tanh(h)

    out_ref[...] = h.astype(out_ref.dtype)


def init_fcn_params(key, n_input, n_output, n_hidden, n_layers, dtype=jnp.float32):
    """Params matching FCN(n_input, n_output, n_hidden, n_layers).

    Returns a flat list [w0, b0, ..., wL, bL] with weights as (out, in)
    (torch.nn.Linear layout) and biases as (out, 1). PyTorch-Linear-style
    uniform(-1/sqrt(fan_in), +1/sqrt(fan_in)) init.
    """
    dims = [n_input] + [n_hidden] * n_layers + [n_output]
    params = []
    for i in range(len(dims) - 1):
        din, dout = dims[i], dims[i + 1]
        key, kw, kb = jax.random.split(key, 3)
        bound = 1.0 / float(din) ** 0.5
        w = jax.random.uniform(kw, (dout, din), dtype, -bound, bound)
        b = jax.random.uniform(kb, (dout, 1), dtype, -bound, bound)
        params += [w, b]
    return params


@functools.partial(jax.jit, static_argnames=("block_b",))
def fcn_forward(x, params, *, block_b=512):
    """Pallas TPU forward pass of FCN. x: (B, n_input) -> (B, n_output)."""
    B, n_input = x.shape
    n_hidden = params[0].shape[0]
    n_output = params[-1].shape[0]
    n_linear = len(params) // 2
    dtype = x.dtype
    itemsize = x.dtype.itemsize

    # Choose a hardware-friendly tile (multiple of 128 lanes, capped at
    # block_b) and pad the batch so any caller batch size works.
    bb = _round_up(min(block_b, _round_up(B, 128)), 128)
    B_pad = _round_up(B, bb)
    grid = (B_pad // bb,)

    x_pad = jnp.pad(x, ((0, B_pad - B), (0, 0)))
    x_t = x_pad.T                                            # (n_input, B_pad)

    x_spec = pl.BlockSpec((n_input, bb), lambda i: (0, i))
    # Params have a constant block index, so Pallas keeps them resident in
    # VMEM and does not re-DMA them on later grid steps.
    param_specs = [pl.BlockSpec(p.shape, lambda i: (0, 0)) for p in params]
    out_spec = pl.BlockSpec((n_output, bb), lambda i: (0, i))

    flops = 2 * B_pad * (
        n_input * n_hidden
        + max(n_linear - 2, 0) * n_hidden * n_hidden
        + n_hidden * n_output
    )
    transcendentals = B_pad * n_hidden * max(n_linear - 1, 0)
    bytes_accessed = (
        x_t.size * itemsize
        + sum(p.size * p.dtype.itemsize for p in params)
        + n_output * B_pad * itemsize
    )

    out_t = pl.pallas_call(
        _mlp_kernel,
        out_shape=jax.ShapeDtypeStruct((n_output, B_pad), dtype),
        grid_spec=pltpu.PrefetchScalarGridSpec(
            num_scalar_prefetch=0,
            grid=grid,
            in_specs=[x_spec] + param_specs,
            out_specs=out_spec,
        ),
        compiler_params=pltpu.CompilerParams(
            dimension_semantics=("parallel",),
        ),
        cost_estimate=pl.CostEstimate(
            flops=flops,
            transcendentals=transcendentals,
            bytes_accessed=bytes_accessed,
        ),
    )(x_t, *params)

    return out_t.T[:B]


def fcn_reference(x, params):
    """Pure-JAX reference identical to the PyTorch FCN forward."""
    h = x.astype(jnp.float32)
    n_linear = len(params) // 2
    for i in range(n_linear):
        w, b = params[2 * i], params[2 * i + 1]
        h = h @ w.T + b[:, 0]
        if i < n_linear - 1:
            h = jnp.tanh(h)
    return h.astype(x.dtype)


if __name__ == "__main__":
    # FCN(n_input=2, n_output=1, n_hidden=32, n_layers=3): typical PINN sizing.
    n_input, n_output, n_hidden, n_layers = 2, 1, 32, 3
    batch = 1000  # deliberately not a multiple of the tile to exercise padding

    key = jax.random.PRNGKey(0)
    key, kx = jax.random.split(key)
    x = jax.random.normal(kx, (batch, n_input), jnp.float32)
    params = init_fcn_params(key, n_input, n_output, n_hidden, n_layers)

    y = fcn_forward(x, params, block_b=512)
    y = jax.block_until_ready(y)

    y_ref = fcn_reference(x, params)
    assert y.shape == (batch, n_output)
    assert jnp.allclose(y, y_ref, atol=2e-5, rtol=2e-5), "mismatch vs reference"

    print("KERNEL_OK")
</pallas_src>

<mosaic_0001>
module attributes {stable_mosaic.version = 11 : i64} {
  func.func @_mlp_kernel(%arg0: i32, %arg1: memref<2x512xf32, #tpu.memory_space<vmem>>, %arg2: memref<32x2xf32, #tpu.memory_space<vmem>>, %arg3: memref<32x1xf32, #tpu.memory_space<vmem>>, %arg4: memref<32x32xf32, #tpu.memory_space<vmem>>, %arg5: memref<32x1xf32, #tpu.memory_space<vmem>>, %arg6: memref<32x32xf32, #tpu.memory_space<vmem>>, %arg7: memref<32x1xf32, #tpu.memory_space<vmem>>, %arg8: memref<1x32xf32, #tpu.memory_space<vmem>>, %arg9: memref<1x1xf32, #tpu.memory_space<vmem>>, %arg10: memref<1x512xf32, #tpu.memory_space<vmem>>) attributes {dimension_semantics = [#tpu.dimension_semantics<parallel>], iteration_bounds = array<i64: 2>, scalar_prefetch = 0 : i64, scratch_operands = 0 : i64, tpu.core_type = #tpu.core_type<tc>, window_params = [{transform_indices = @transform_0, window_bounds = array<i64: 2, 512>}, {pipeline_mode = #tpu.pipeline_mode<synchronous>, transform_indices = @transform_1, window_bounds = array<i64: 32, 2>}, {pipeline_mode = #tpu.pipeline_mode<synchronous>, transform_indices = @transform_2, window_bounds = array<i64: 32, 1>}, {pipeline_mode = #tpu.pipeline_mode<synchronous>, transform_indices = @transform_3, window_bounds = array<i64: 32, 32>}, {pipeline_mode = #tpu.pipeline_mode<synchronous>, transform_indices = @transform_4, window_bounds = array<i64: 32, 1>}, {pipeline_mode = #tpu.pipeline_mode<synchronous>, transform_indices = @transform_5, window_bounds = array<i64: 32, 32>}, {pipeline_mode = #tpu.pipeline_mode<synchronous>, transform_indices = @transform_6, window_bounds = array<i64: 32, 1>}, {pipeline_mode = #tpu.pipeline_mode<synchronous>, transform_indices = @transform_7, window_bounds = array<i64: 1, 32>}, {pipeline_mode = #tpu.pipeline_mode<synchronous>, transform_indices = @transform_8, window_bounds = array<i64: 1, 1>}, {transform_indices = @transform_9, window_bounds = array<i64: 1, 512>}]} {
    %c0 = arith.constant 0 : index
    %c0_0 = arith.constant 0 : index
    %0 = vector.load %arg1[%c0, %c0_0] : memref<2x512xf32, #tpu.memory_space<vmem>>, vector<2x512xf32>
    %c0_1 = arith.constant 0 : index
    %c0_2 = arith.constant 0 : index
    %1 = vector.load %arg2[%c0_1, %c0_2] : memref<32x2xf32, #tpu.memory_space<vmem>>, vector<32x2xf32>
    %c0_3 = arith.constant 0 : index
    %c0_4 = arith.constant 0 : index
    %2 = vector.load %arg3[%c0_3, %c0_4] : memref<32x1xf32, #tpu.memory_space<vmem>>, vector<32x1xf32>
    %3 = vector.extract_strided_slice %1 {offsets = [0, 0], sizes = [32, 1], strides = [1, 1]} : vector<32x2xf32> to vector<32x1xf32>
    %4 = vector.extract_strided_slice %0 {offsets = [0, 0], sizes = [1, 512], strides = [1, 1]} : vector<2x512xf32> to vector<1x512xf32>
    %5 = vector.broadcast %3 : vector<32x1xf32> to vector<32x512xf32>
    %6 = vector.broadcast %4 : vector<1x512xf32> to vector<32x512xf32>
    %7 = arith.mulf %5, %6 : vector<32x512xf32>
    %8 = vector.extract_strided_slice %1 {offsets = [0, 1], sizes = [32, 1], strides = [1, 1]} : vector<32x2xf32> to vector<32x1xf32>
    %9 = vector.extract_strided_slice %0 {offsets = [1, 0], sizes = [1, 512], strides = [1, 1]} : vector<2x512xf32> to vector<1x512xf32>
    %10 = vector.broadcast %8 : vector<32x1xf32> to vector<32x512xf32>
    %11 = vector.broadcast %9 : vector<1x512xf32> to vector<32x512xf32>
    %12 = arith.mulf %10, %11 : vector<32x512xf32>
    %13 = arith.addf %7, %12 : vector<32x512xf32>
    %14 = vector.broadcast %2 : vector<32x1xf32> to vector<32x512xf32>
    %15 = arith.addf %13, %14 : vector<32x512xf32>
    %16 = math.tanh %15 : vector<32x512xf32>
    %c0_5 = arith.constant 0 : index
    %c0_6 = arith.constant 0 : index
    %17 = vector.load %arg4[%c0_5, %c0_6] : memref<32x32xf32, #tpu.memory_space<vmem>>, vector<32x32xf32>
    %c0_7 = arith.constant 0 : index
    %c0_8 = arith.constant 0 : index
    %18 = vector.load %arg5[%c0_7, %c0_8] : memref<32x1xf32, #tpu.memory_space<vmem>>, vector<32x1xf32>
    %cst = arith.constant dense<0.000000e+00> : vector<32x512xf32>
    %19 = tpu.matmul %17, %16, %cst {dimension_numbers = #tpu.dot_dimension_numbers<[1], [0], [0], [1], [0, 0, 1, 1], [], []>} : vector<32x32xf32>, vector<32x512xf32>, vector<32x512xf32> -> vector<32x512xf32>
    %20 = vector.broadcast %18 : vector<32x1xf32> to vector<32x512xf32>
    %21 = arith.addf %19, %20 : vector<32x512xf32>
    %22 = math.tanh %21 : vector<32x512xf32>
    %c0_9 = arith.constant 0 : index
    %c0_10 = arith.constant 0 : index
    %23 = vector.load %arg6[%c0_9, %c0_10] : memref<32x32xf32, #tpu.memory_space<vmem>>, vector<32x32xf32>
    %c0_11 = arith.constant 0 : index
    %c0_12 = arith.constant 0 : index
    %24 = vector.load %arg7[%c0_11, %c0_12] : memref<32x1xf32, #tpu.memory_space<vmem>>, vector<32x1xf32>
    %cst_13 = arith.constant dense<0.000000e+00> : vector<32x512xf32>
    %25 = tpu.matmul %23, %22, %cst_13 {dimension_numbers = #tpu.dot_dimension_numbers<[1], [0], [0], [1], [0, 0, 1, 1], [], []>} : vector<32x32xf32>, vector<32x512xf32>, vector<32x512xf32> -> vector<32x512xf32>
    %26 = vector.broadcast %24 : vector<32x1xf32> to vector<32x512xf32>
    %27 = arith.addf %25, %26 : vector<32x512xf32>
    %28 = math.tanh %27 : vector<32x512xf32>
    %c0_14 = arith.constant 0 : index
    %c0_15 = arith.constant 0 : index
    %29 = vector.load %arg8[%c0_14, %c0_15] : memref<1x32xf32, #tpu.memory_space<vmem>>, vector<1x32xf32>
    %c0_16 = arith.constant 0 : index
    %c0_17 = arith.constant 0 : index
    %30 = vector.load %arg9[%c0_16, %c0_17] : memref<1x1xf32, #tpu.memory_space<vmem>>, vector<1x1xf32>
    %cst_18 = arith.constant dense<0.000000e+00> : vector<1x512xf32>
    %31 = tpu.matmul %29, %28, %cst_18 {dimension_numbers = #tpu.dot_dimension_numbers<[1], [0], [0], [1], [0, 0, 1, 1], [], []>} : vector<1x32xf32>, vector<32x512xf32>, vector<1x512xf32> -> vector<1x512xf32>
    %32 = vector.broadcast %30 : vector<1x1xf32> to vector<1x512xf32>
    %33 = arith.addf %31, %32 : vector<1x512xf32>
    %c0_19 = arith.constant 0 : index
    %c0_20 = arith.constant 0 : index
    %34 = vector.load %arg10[%c0_19, %c0_20] : memref<1x512xf32, #tpu.memory_space<vmem>>, vector<1x512xf32>
    tpu.vector_store %arg10[%c0_19, %c0_20], %33 {strides = array<i32>} : memref<1x512xf32, #tpu.memory_space<vmem>>, vector<1x512xf32>,
    return
  }
  func.func @transform_0(%arg0: i32) -> (i32, i32) {
    %c0_i32 = arith.constant 0 : i32
    %c0_i32_0 = arith.constant 0 : i32
    return %c0_i32, %arg0 : i32, i32
  }
  func.func @transform_1(%arg0: i32) -> (i32, i32) {
    %c0_i32 = arith.constant 0 : i32
    %c0_i32_0 = arith.constant 0 : i32
    %c0_i32_1 = arith.constant 0 : i32
    return %c0_i32, %c0_i32_0 : i32, i32
  }
  func.func @transform_2(%arg0: i32) -> (i32, i32) {
    %c0_i32 = arith.constant 0 : i32
    %c0_i32_0 = arith.constant 0 : i32
    %c0_i32_1 = arith.constant 0 : i32
    return %c0_i32, %c0_i32_0 : i32, i32
  }
  func.func @transform_3(%arg0: i32) -> (i32, i32) {
    %c0_i32 = arith.constant 0 : i32
    %c0_i32_0 = arith.constant 0 : i32
    %c0_i32_1 = arith.constant 0 : i32
    return %c0_i32, %c0_i32_0 : i32, i32
  }
  func.func @transform_4(%arg0: i32) -> (i32, i32) {
    %c0_i32 = arith.constant 0 : i32
    %c0_i32_0 = arith.constant 0 : i32
    %c0_i32_1 = arith.constant 0 : i32
    return %c0_i32, %c0_i32_0 : i32, i32
  }
  func.func @transform_5(%arg0: i32) -> (i32, i32) {
    %c0_i32 = arith.constant 0 : i32
    %c0_i32_0 = arith.constant 0 : i32
    %c0_i32_1 = arith.constant 0 : i32
    return %c0_i32, %c0_i32_0 : i32, i32
  }
  func.func @transform_6(%arg0: i32) -> (i32, i32) {
    %c0_i32 = arith.constant 0 : i32
    %c0_i32_0 = arith.constant 0 : i32
    %c0_i32_1 = arith.constant 0 : i32
    return %c0_i32, %c0_i32_0 : i32, i32
  }
  func.func @transform_7(%arg0: i32) -> (i32, i32) {
    %c0_i32 = arith.constant 0 : i32
    %c0_i32_0 = arith.constant 0 : i32
    %c0_i32_1 = arith.constant 0 : i32
    return %c0_i32, %c0_i32_0 : i32, i32
  }
  func.func @transform_8(%arg0: i32) -> (i32, i32) {
    %c0_i32 = arith.constant 0 : i32
    %c0_i32_0 = arith.constant 0 : i32
    %c0_i32_1 = arith.constant 0 : i32
    return %c0_i32, %c0_i32_0 : i32, i32
  }
  func.func @transform_9(%arg0: i32) -> (i32, i32) {
    %c0_i32 = arith.constant 0 : i32
    %c0_i32_0 = arith.constant 0 : i32
    return %c0_i32, %arg0 : i32, i32
  }
}

</mosaic_0001>

<llo_original>
// kernel: fcn_forward.1
$region0: #{fcn_forward.1}
  #allocation0 [shape = 'u32[]', space=smem, size = 0x4, offset = 0x4, fixed_abs, tag = 'smem constant byte address 0x4 - core index']
  #allocation1 [shape = 'u32[144,128]{1,0:T(1,128)}', space=vmem, size = 0x12000, scoped, tag = 'internal scratch']
  #allocation2 [shape = 'f32[1,1]{1,0:T(1,128)S(1)}', space=vmem, size = 0x200, scoped, tag = 'scoped memory for fcn_forward.1']
  %s0 = inlined_call_operand.vmem [shape: f32[2,1024], index: 0, kind: input, shape index: {}]
  %s1 = inlined_call_operand.vmem [shape: f32[32,2], index: 1, kind: input, shape index: {}]
  %s2 = inlined_call_operand.vmem [shape: f32[32,1], index: 2, kind: input, shape index: {}]
  %s3 = inlined_call_operand.vmem [shape: f32[32,32], index: 3, kind: input, shape index: {}]
  %s4 = inlined_call_operand.vmem [shape: f32[32,1], index: 4, kind: input, shape index: {}]
  %s5 = inlined_call_operand.vmem [shape: f32[32,32], index: 5, kind: input, shape index: {}]
  %s6 = inlined_call_operand.vmem [shape: f32[32,1], index: 6, kind: input, shape index: {}]
  %s7 = inlined_call_operand.vmem [shape: f32[1,32], index: 7, kind: input, shape index: {}]
  %s8 = inlined_call_operand.<no memory space> [shape: f32[1,1], index: 8, kind: input, shape index: {}]
  %s9 = inlined_call_operand.vmem [shape: f32[1,1024], index: 9, kind: output, shape index: {}]
  %s10 = sld [smem:[#allocation0]]
  $region69: #{fcn_forward.1} parent=0
    _
  %s12 = ssub.s32 1, %s10
  %s13 = scalar_select 0, %s12, %s10
  %v14 = vstv %s8
  %15 = vst [vmem:[#allocation2] sm:$0x1] %v14
  loop: start=0, step=1, limit=4
  $region2: #{fcn_forward.1} parent=0 // loop_pre_header
    _
  $region3: #{fcn_forward.1} parent=0 // loop_header
    %s17 = sphi 0, %s21
    %p18 = scmp.ge.s32.totalorder %s17, 4
    %s27 = sphi 0, %s29
    %s30 = sphi 0, %s27
    %s31 = sphi 0, %s30
    %s47 = sphi 0, %s31
    %s51 = sphi 0, %s51
    %s53 = sphi 0, %s51
    %s54 = sphi 0, %s53
    %s68 = sphi 0, %s54
    %s72 = sphi 0, %s72
    %s74 = sphi 0, %s72
    %s75 = sphi 0, %s74
    %s89 = sphi 0, %s75
    %s93 = sphi 0, %s93
    %s95 = sphi 0, %s93
    %s96 = sphi 0, %s95
    %s110 = sphi 0, %s96
    %s114 = sphi 0, %s114
    %s116 = sphi 0, %s114
    %s117 = sphi 0, %s116
    %s131 = sphi 0, %s117
    %s135 = sphi 0, %s135
    %s137 = sphi 0, %s135
    %s138 = sphi 0, %s137
    %s152 = sphi 0, %s138
    %s156 = sphi 0, %s156
    %s158 = sphi 0, %s156
    %s159 = sphi 0, %s158
    %s173 = sphi 0, %s159
    %s177 = sphi 0, %s177
    %s179 = sphi 0, %s177
    %s180 = sphi 0, %s179
    %s194 = sphi 0, %s180
    %s198 = sphi 0, %s198
    %s200 = sphi 0, %s198
    %s201 = sphi 0, %s200
    %s215 = sphi 0, %s201
    %s221 = sphi 0, %s223
    %s224 = sphi 0, %s221
    %s225 = sphi 0, %s224
    %s241 = sphi 0, %s225
  $region4: #{fcn_forward.1} parent=0 // loop_header_branch
    %20 = sbr.rel (%p18) target = $region8
  $region5: #{fcn_forward.1} parent=0 // loop_body
    %s22 = ssub.s32 %s17, 1
    %s23 = ssub.s32 %s17, 2
    %s24 = sadd.s32 %s17, 1
    %s25 = ssub.s32 %s17, %s24
    %p26 = scmp.eq.s32.totalorder %s25, 0
    %s28 = sadd.s32 %s27, 1
    %s29 = scalar_select %p26, %s27, %s28
    %p32 = pneg %p26
    %p33 = scmp.eq.s32.totalorder %s17, 1
    %p34 = por %p32, %p33
    %p35 = scmp.ne.s32.totalorder %s27, %s30
    %p36 = scmp.eq.s32.totalorder %s17, 0
    %p37 = por %p35, %p36
    %p38 = scmp.ne.s32.totalorder %s27, %s30
    %p39 = scmp.eq.s32.totalorder %s22, 1
    %p40 = por %p38, %p39
    %p41 = scmp.ne.s32.totalorder %s30, %s31
    %p42 = scmp.eq.s32.totalorder %s22, 0
    %p43 = por %p41, %p42
    %p44 = scmp.ne.s32.totalorder %s30, %s31
    %p45 = scmp.eq.s32.totalorder %s23, 1
    %p46 = por %p44, %p45
    %p48 = scmp.ne.s32.totalorder %s31, %s47
    %p49 = scmp.eq.s32.totalorder %s23, 0
    %p50 = por %p48, %p49
    %s52 = sadd.s32 %s51, 1
    %p55 = scmp.eq.s32.totalorder %s17, 1
    %p56 = scmp.ne.s32.totalorder %s51, %s53
    %p57 = scmp.eq.s32.totalorder %s17, 0
    %p58 = por %p56, %p57
    %p59 = scmp.ne.s32.totalorder %s51, %s53
    %p60 = scmp.eq.s32.totalorder %s22, 1
    %p61 = por %p59, %p60
    %p62 = scmp.ne.s32.totalorder %s53, %s54
    %p63 = scmp.eq.s32.totalorder %s22, 0
    %p64 = por %p62, %p63
    %p65 = scmp.ne.s32.totalorder %s53, %s54
    %p66 = scmp.eq.s32.totalorder %s23, 1
    %p67 = por %p65, %p66
    %p69 = scmp.ne.s32.totalorder %s54, %s68
    %p70 = scmp.eq.s32.totalorder %s23, 0
    %p71 = por %p69, %p70
    %s73 = sadd.s32 %s72, 1
    %p76 = scmp.eq.s32.totalorder %s17, 1
    %p77 = scmp.ne.s32.totalorder %s72, %s74
    %p78 = scmp.eq.s32.totalorder %s17, 0
    %p79 = por %p77, %p78
    %p80 = scmp.ne.s32.totalorder %s72, %s74
    %p81 = scmp.eq.s32.totalorder %s22, 1
    %p82 = por %p80, %p81
    %p83 = scmp.ne.s32.totalorder %s74, %s75
    %p84 = scmp.eq.s32.totalorder %s22, 0
    %p85 = por %p83, %p84
    %p86 = scmp.ne.s32.totalorder %s74, %s75
    %p87 = scmp.eq.s32.totalorder %s23, 1
    %p88 = por %p86, %p87
    %p90 = scmp.ne.s32.totalorder %s75, %s89
    %p91 = scmp.eq.s32.totalorder %s23, 0
    %p92 = por %p90, %p91
    %s94 = sadd.s32 %s93, 1
    %p97 = scmp.eq.s32.totalorder %s17, 1
    %p98 = scmp.ne.s32.totalorder %s93, %s95
    %p99 = scmp.eq.s32.totalorder %s17, 0
    %p100 = por %p98, %p99
    %p101 = scmp.ne.s32.totalorder %s93, %s95
    %p102 = scmp.eq.s32.totalorder %s22, 1
    %p103 = por %p101, %p102
    %p104 = scmp.ne.s32.totalorder %s95, %s96
    %p105 = scmp.eq.s32.totalorder %s22, 0
    %p106 = por %p104, %p105
    %p107 = scmp.ne.s32.totalorder %s95, %s96
    %p108 = scmp.eq.s32.totalorder %s23, 1
    %p109 = por %p107, %p108
    %p111 = scmp.ne.s32.totalorder %s96, %s110
    %p112 = scmp.eq.s32.totalorder %s23, 0
    %p113 = por %p111, %p112
    %s115 = sadd.s32 %s114, 1
    %p118 = scmp.eq.s32.totalorder %s17, 1
    %p119 = scmp.ne.s32.totalorder %s114, %s116
    %p120 = scmp.eq.s32.totalorder %s17, 0
    %p121 = por %p119, %p120
    %p122 = scmp.ne.s32.totalorder %s114, %s116
    %p123 = scmp.eq.s32.totalorder %s22, 1
    %p124 = por %p122, %p123
    %p125 = scmp.ne.s32.totalorder %s116, %s117
    %p126 = scmp.eq.s32.totalorder %s22, 0
    %p127 = por %p125, %p126
    %p128 = scmp.ne.s32.totalorder %s116, %s117
    %p129 = scmp.eq.s32.totalorder %s23, 1
    %p130 = por %p128, %p129
    %p132 = scmp.ne.s32.totalorder %s117, %s131
    %p133 = scmp.eq.s32.totalorder %s23, 0
    %p134 = por %p132, %p133
    %s136 = sadd.s32 %s135, 1
    %p139 = scmp.eq.s32.totalorder %s17, 1
    %p140 = scmp.ne.s32.totalorder %s135, %s137
    %p141 = scmp.eq.s32.totalorder %s17, 0
    %p142 = por %p140, %p141
    %p143 = scmp.ne.s32.totalorder %s135, %s137
    %p144 = scmp.eq.s32.totalorder %s22, 1
    %p145 = por %p143, %p144
    %p146 = scmp.ne.s32.totalorder %s137, %s138
    %p147 = scmp.eq.s32.totalorder %s22, 0
    %p148 = por %p146, %p147
    %p149 = scmp.ne.s32.totalorder %s137, %s138
    %p150 = scmp.eq.s32.totalorder %s23, 1
    %p151 = por %p149, %p150
    %p153 = scmp.ne.s32.totalorder %s138, %s152
    %p154 = scmp.eq.s32.totalorder %s23, 0
    %p155 = por %p153, %p154
    %s157 = sadd.s32 %s156, 1
    %p160 = scmp.eq.s32.totalorder %s17, 1
    %p161 = scmp.ne.s32.totalorder %s156, %s158
    %p162 = scmp.eq.s32.totalorder %s17, 0
    %p163 = por %p161, %p162
    %p164 = scmp.ne.s32.totalorder %s156, %s158
    %p165 = scmp.eq.s32.totalorder %s22, 1
    %p166 = por %p164, %p165
    %p167 = scmp.ne.s32.totalorder %s158, %s159
    %p168 = scmp.eq.s32.totalorder %s22, 0
    %p169 = por %p167, %p168
    %p170 = scmp.ne.s32.totalorder %s158, %s159
    %p171 = scmp.eq.s32.totalorder %s23, 1
    %p172 = por %p170, %p171
    %p174 = scmp.ne.s32.totalorder %s159, %s173
    %p175 = scmp.eq.s32.totalorder %s23, 0
    %p176 = por %p174, %p175
    %s178 = sadd.s32 %s177, 1
    %p181 = scmp.eq.s32.totalorder %s17, 1
    %p182 = scmp.ne.s32.totalorder %s177, %s179
    %p183 = scmp.eq.s32.totalorder %s17, 0
    %p184 = por %p182, %p183
    %p185 = scmp.ne.s32.totalorder %s177, %s179
    %p186 = scmp.eq.s32.totalorder %s22, 1
    %p187 = por %p185, %p186
    %p188 = scmp.ne.s32.totalorder %s179, %s180
    %p189 = scmp.eq.s32.totalorder %s22, 0
    %p190 = por %p188, %p189
    %p191 = scmp.ne.s32.totalorder %s179, %s180
    %p192 = scmp.eq.s32.totalorder %s23, 1
    %p193 = por %p191, %p192
    %p195 = scmp.ne.s32.totalorder %s180, %s194
    %p196 = scmp.eq.s32.totalorder %s23, 0
    %p197 = por %p195, %p196
    %s199 = sadd.s32 %s198, 1
    %p202 = scmp.eq.s32.totalorder %s17, 1
    %p203 = scmp.ne.s32.totalorder %s198, %s200
    %p204 = scmp.eq.s32.totalorder %s17, 0
    %p205 = por %p203, %p204
    %p206 = scmp.ne.s32.totalorder %s198, %s200
    %p207 = scmp.eq.s32.totalorder %s22, 1
    %p208 = por %p206, %p207
    %p209 = scmp.ne.s32.totalorder %s200, %s201
    %p210 = scmp.eq.s32.totalorder %s22, 0
    %p211 = por %p209, %p210
    %p212 = scmp.ne.s32.totalorder %s200, %s201
    %p213 = scmp.eq.s32.totalorder %s23, 1
    %p214 = por %p212, %p213
    %p216 = scmp.ne.s32.totalorder %s201, %s215
    %p217 = scmp.eq.s32.totalorder %s23, 0
    %p218 = por %p216, %p217
    %s219 = ssub.s32 %s17, %s24
    %p220 = scmp.eq.s32.totalorder %s219, 0
    %s222 = sadd.s32 %s221, 1
    %s223 = scalar_select %p220, %s221, %s222
    %p226 = pneg %p220
    %p227 = scmp.eq.s32.totalorder %s17, 1
    %p228 = por %p226, %p227
    %p229 = scmp.ne.s32.totalorder %s221, %s224
    %p230 = scmp.eq.s32.totalorder %s17, 0
    %p231 = por %p229, %p230
    %p232 = scmp.ne.s32.totalorder %s221, %s224
    %p233 = scmp.eq.s32.totalorder %s22, 1
    %p234 = por %p232, %p233
    %p235 = scmp.ne.s32.totalorder %s224, %s225
    %p236 = scmp.eq.s32.totalorder %s22, 0
    %p237 = por %p235, %p236
    %p238 = scmp.ne.s32.totalorder %s224, %s225
    %p239 = scmp.eq.s32.totalorder %s23, 1
    %p240 = por %p238, %p239
    %p242 = scmp.ne.s32.totalorder %s225, %s241
    %p243 = scmp.eq.s32.totalorder %s23, 0
    %p244 = por %p242, %p243
    %p245 = scmp.le.s32.totalorder 1, %s17
    %p246 = scmp.lt.s32.totalorder %s17, 3
    %p247 = pnand %p245, %p246
    %p248 = pneg %p247
    // Predicated region
    $region9: #{fcn_forward.1} parent=5 // pred_check
      _
    $region10: #{fcn_forward.1} parent=5 // pred_check_branch
      %250 = sbr.rel (%p247) target = $region12
    $region11: #{fcn_forward.1} parent=5 // pred_region
      %s251 = ssub.s32 %s17, 1
      // Predicated region
      $region13: #{fcn_forward.1} parent=11 // pred_check
        %p252 = pneg %p64
      $region14: #{fcn_forward.1} parent=11 // pred_check_branch
        %254 = sbr.rel (%p252) target = $region16
      $region15: #{fcn_forward.1} parent=11 // pred_region
        _
      $region16: #{fcn_forward.1} parent=11 // pred_fallthru
        _
      // Predicated region
      $region17: #{fcn_forward.1} parent=11 // pred_check
        %p255 = pneg %p85
      $region18: #{fcn_forward.1} parent=11 // pred_check_branch
        %257 = sbr.rel (%p255) target = $region20
      $region19: #{fcn_forward.1} parent=11 // pred_region
        _
      $region20: #{fcn_forward.1} parent=11 // pred_fallthru
        _
      // Predicated region
      $region21: #{fcn_forward.1} parent=11 // pred_check
        %p258 = pneg %p106
      $region22: #{fcn_forward.1} parent=11 // pred_check_branch
        %260 = sbr.rel (%p258) target = $region24
      $region23: #{fcn_forward.1} parent=11 // pred_region
        _
      $region24: #{fcn_forward.1} parent=11 // pred_fallthru
        _
      // Predicated region
      $region25: #{fcn_forward.1} parent=11 // pred_check
        %p261 = pneg %p127
      $region26: #{fcn_forward.1} parent=11 // pred_check_branch
        %263 = sbr.rel (%p261) target = $region28
      $region27: #{fcn_forward.1} parent=11 // pred_region
        _
      $region28: #{fcn_forward.1} parent=11 // pred_fallthru
        _
      // Predicated region
      $region29: #{fcn_forward.1} parent=11 // pred_check
        %p264 = pneg %p148
      $region30: #{fcn_forward.1} parent=11 // pred_check_branch
        %266 = sbr.rel (%p264) target = $region32
      $region31: #{fcn_forward.1} parent=11 // pred_region
        _
      $region32: #{fcn_forward.1} parent=11 // pred_fallthru
        _
      // Predicated region
      $region33: #{fcn_forward.1} parent=11 // pred_check
        %p267 = pneg %p169
      $region34: #{fcn_forward.1} parent=11 // pred_check_branch
        %269 = sbr.rel (%p267) target = $region36
      $region35: #{fcn_forward.1} parent=11 // pred_region
        _
      $region36: #{fcn_forward.1} parent=11 // pred_fallthru
        _
      // Predicated region
      $region37: #{fcn_forward.1} parent=11 // pred_check
        %p270 = pneg %p190
      $region38: #{fcn_forward.1} parent=11 // pred_check_branch
        %272 = sbr.rel (%p270) target = $region40
      $region39: #{fcn_forward.1} parent=11 // pred_region
        _
      $region40: #{fcn_forward.1} parent=11 // pred_fallthru
        _
      // Predicated region
      $region41: #{fcn_forward.1} parent=11 // pred_check
        %p273 = pneg %p211
      $region42: #{fcn_forward.1} parent=11 // pred_check_branch
        %275 = sbr.rel (%p273) target = $region44
      $region43: #{fcn_forward.1} parent=11 // pred_region
        _
      $region44: #{fcn_forward.1} parent=11 // pred_fallthru
        _
    $region12: #{fcn_forward.1} parent=5 // pred_fallthru
      _
    %p276 = scmp.lt.s32.totalorder %s17, 2
    // Predicated region
    $region45: #{fcn_forward.1} parent=5 // pred_check
      %p277 = pneg %p276
    $region46: #{fcn_forward.1} parent=5 // pred_check_branch
      %279 = sbr.rel (%p277) target = $region48
    $region47: #{fcn_forward.1} parent=5 // pred_region
      // Predicated region
      $region49: #{fcn_forward.1} parent=47 // pred_check
        %p280 = pneg %p37
      $region50: #{fcn_forward.1} parent=47 // pred_check_branch
        %282 = sbr.rel (%p280) target = $region52
      $region51: #{fcn_forward.1} parent=47 // pred_region
        %s283 = smul.u32 4, %s17
        %p284 = scmp.lt.s32.totalorder %s283, 7
        %s285 = scalar_select %p284, %s283, 7
        %s286 = smul.addr %s285, 2
        %s287 = scalar_lea.vmem %s0, %s286
        %s288 = smul.u32 4, %s17
      $region52: #{fcn_forward.1} parent=47 // pred_fallthru
        _
    $region48: #{fcn_forward.1} parent=5 // pred_fallthru
      _
    %p289 = scmp.le.s32.totalorder 1, %s17
    %p290 = scmp.lt.s32.totalorder %s17, 3
    %p291 = pnand %p289, %p290
    %p292 = pneg %p291
    // Predicated region
    $region53: #{fcn_forward.1} parent=5 // pred_check
      _
    $region54: #{fcn_forward.1} parent=5 // pred_check_branch
      %294 = sbr.rel (%p291) target = $region56
    $region55: #{fcn_forward.1} parent=5 // pred_region
      %s295 = ssub.s32 %s17, 1
      %s296 = smul.u32 4, %s22
      %p297 = scmp.lt.s32.totalorder %s296, 7
      %s298 = scalar_select %p297, %s296, 7
      %s299 = smul.addr %s298, 2
      %s300 = scalar_lea.vmem %s0, %s299
      %p301 = pneg %p43
      %p302 = pneg %p40
      %p303 = pneg %p64
      %p304 = pneg %p61
      %p305 = pneg %p85
      %p306 = pneg %p82
      %p307 = pneg %p106
      %p308 = pneg %p103
      %p309 = pneg %p127
      %p310 = pneg %p124
      %p311 = pneg %p148
      %p312 = pneg %p145
      %p313 = pneg %p169
      %p314 = pneg %p166
      %p315 = pneg %p190
      %p316 = pneg %p187
      %p317 = pneg %p211
      %p318 = pneg %p208
      %p319 = pneg %p237
      %p320 = pneg %p234
      %s321 = smul.u32 4, %s22
      %p322 = scmp.lt.s32.totalorder %s321, 7
      %s323 = scalar_select %p322, %s321, 7
      %s324 = scalar_lea.vmem %s9, %s323
      %s325 = smul.u32 4, %s22
      %p326 = scmp.lt.s32.totalorder %s325, 7
      %s327 = scalar_select %p326, %s325, 7
      %s328 = smul.addr %s327, 2
      %s329 = scalar_lea.vmem %s0, %s328
      %s330 = smul.u32 4, %s22
      %s331 = smul.u32 4, %s22
      %p332 = scmp.lt.s32.totalorder %s331, 7
      %s333 = scalar_select %p332, %s331, 7
      %s334 = scalar_lea.vmem %s9, %s333
      %s335 = smul.u32 4, %s22
      %v336 = vld [vmem:[%s329] sm:$0xff]
      %v337 = vld [vmem:[%s1] sm:$0xff]
      %v338 = vld [vmem:[%s1 + $0x8] sm:$0xff]
      %v339 = vld [vmem:[%s1 + $0x10] sm:$0xff]
      %v340 = vld [vmem:[%s1 + $0x18] sm:$0xff]
      %v341 = vld [vmem:[%s2] sm:$0xff]
      %v342 = vld [vmem:[%s2 + $0x8] sm:$0xff]
      %v343 = vld [vmem:[%s2 + $0x10] sm:$0xff]
      %v344 = vld [vmem:[%s2 + $0x18] sm:$0xff]
      %346 = vset.pattern.permute.xlu0 0
      %347 = vperm.xlu0 %346, %v337
      %v348 = vpop.permute.xlu0 %347
      %351 = vset.pattern.permute.xlu0 0
      %352 = vperm.xlu0 %351, %v338
      %v353 = vpop.permute.xlu0 %352
      %356 = vset.pattern.permute.xlu0 0
      %357 = vperm.xlu0 %356, %v339
      %v358 = vpop.permute.xlu0 %357
      %361 = vset.pattern.permute.xlu0 0
      %362 = vperm.xlu0 %361, %v340
      %v363 = vpop.permute.xlu0 %362
      %v366 = vlaneseq
      %v367 = vshrl.u32 %v366, 7
      %v368 = vsub.s32 0, %v367
      %v369 = vrot.slane %v336, %v368
      %v370 = vlaneseq
      %v371 = vshrl.u32 %v370, 7
      %v372 = vsub.s32 2, %v371
      %v373 = vrot.slane %v336, %v372
      %v374 = vlaneseq
      %v375 = vshrl.u32 %v374, 7
      %v376 = vsub.s32 4, %v375
      %v377 = vrot.slane %v336, %v376
      %v378 = vlaneseq
      %v379 = vshrl.u32 %v378, 7
      %v380 = vsub.s32 6, %v379
      %v381 = vrot.slane %v336, %v380
      %v386 = vlaneseq
      %v387 = vshrl.u32 %v386, 7
      %v388 = vsub.s32 0, %v387
      %v389 = vrot.slane %v369, %v388
      %v390 = vlaneseq
      %v391 = vshrl.u32 %v390, 7
      %v392 = vsub.s32 0, %v391
      %v393 = vrot.slane %v373, %v392
      %v394 = vlaneseq
      %v395 = vshrl.u32 %v394, 7
      %v396 = vsub.s32 0, %v395
      %v397 = vrot.slane %v377, %v396
      %v398 = vlaneseq
      %v399 = vshrl.u32 %v398, 7
      %v400 = vsub.s32 0, %v399
      %v401 = vrot.slane %v381, %v400
      %v402 = vmul.f32 %v348, %v389
      %v403 = vmul.f32 %v348, %v393
      %v404 = vmul.f32 %v348, %v397
      %v405 = vmul.f32 %v348, %v401
      %v406 = vmul.f32 %v353, %v389
      %v407 = vmul.f32 %v353, %v393
      %v408 = vmul.f32 %v353, %v397
      %v409 = vmul.f32 %v353, %v401
      %v410 = vmul.f32 %v358, %v389
      %v411 = vmul.f32 %v358, %v393
      %v412 = vmul.f32 %v358, %v397
      %v413 = vmul.f32 %v358, %v401
      %v414 = vmul.f32 %v363, %v389
      %v415 = vmul.f32 %v363, %v393
      %v416 = vmul.f32 %v363, %v397
      %v417 = vmul.f32 %v363, %v401
      %418 = vset.pattern.permute.xlu0 1
      %419 = vperm.xlu0 %418, %v337
      %v420 = vpop.permute.xlu0 %419
      %422 = vset.pattern.permute.xlu0 1
      %423 = vperm.xlu0 %422, %v338
      %v424 = vpop.permute.xlu0 %423
      %426 = vset.pattern.permute.xlu0 1
      %427 = vperm.xlu0 %426, %v339
      %v428 = vpop.permute.xlu0 %427
      %430 = vset.pattern.permute.xlu0 1
      %431 = vperm.xlu0 %430, %v340
      %v432 = vpop.permute.xlu0 %431
      %v434 = vlaneseq
      %v435 = vshrl.u32 %v434, 7
      %v436 = vsub.s32 1, %v435
      %v437 = vrot.slane %v336, %v436
      %v438 = vlaneseq
      %v439 = vshrl.u32 %v438, 7
      %v440 = vsub.s32 3, %v439
      %v441 = vrot.slane %v336, %v440
      %v442 = vlaneseq
      %v443 = vshrl.u32 %v442, 7
      %v444 = vsub.s32 5, %v443
      %v445 = vrot.slane %v336, %v444
      %v446 = vlaneseq
      %v447 = vshrl.u32 %v446, 7
      %v448 = vsub.s32 7, %v447
      %v449 = vrot.slane %v336, %v448
      %v454 = vlaneseq
      %v455 = vshrl.u32 %v454, 7
      %v456 = vsub.s32 1, %v455
      %v457 = vrot.slane %v437, %v456
      %v458 = vlaneseq
      %v459 = vshrl.u32 %v458, 7
      %v460 = vsub.s32 1, %v459
      %v461 = vrot.slane %v441, %v460
      %v462 = vlaneseq
      %v463 = vshrl.u32 %v462, 7
      %v464 = vsub.s32 1, %v463
      %v465 = vrot.slane %v445, %v464
      %v466 = vlaneseq
      %v467 = vshrl.u32 %v466, 7
      %v468 = vsub.s32 1, %v467
      %v469 = vrot.slane %v449, %v468
      %v470 = vmul.f32 %v420, %v457
      %v471 = vmul.f32 %v420, %v461
      %v472 = vmul.f32 %v420, %v465
      %v473 = vmul.f32 %v420, %v469
      %v474 = vmul.f32 %v424, %v457
      %v475 = vmul.f32 %v424, %v461
      %v476 = vmul.f32 %v424, %v465
      %v477 = vmul.f32 %v424, %v469
      %v478 = vmul.f32 %v428, %v457
      %v479 = vmul.f32 %v428, %v461
      %v480 = vmul.f32 %v428, %v465
      %v481 = vmul.f32 %v428, %v469
      %v482 = vmul.f32 %v432, %v457
      %v483 = vmul.f32 %v432, %v461
      %v484 = vmul.f32 %v432, %v465
      %v485 = vmul.f32 %v432, %v469
      %v486 = vadd.f32 %v402, %v470
      %v487 = vadd.f32 %v403, %v471
      %v488 = vadd.f32 %v404, %v472
      %v489 = vadd.f32 %v405, %v473
      %v490 = vadd.f32 %v406, %v474
      %v491 = vadd.f32 %v407, %v475
      %v492 = vadd.f32 %v408, %v476
      %v493 = vadd.f32 %v409, %v477
      %v494 = vadd.f32 %v410, %v478
      %v495 = vadd.f32 %v411, %v479
      %v496 = vadd.f32 %v412, %v480
      %v497 = vadd.f32 %v413, %v481
      %v498 = vadd.f32 %v414, %v482
      %v499 = vadd.f32 %v415, %v483
      %v500 = vadd.f32 %v416, %v484
      %v501 = vadd.f32 %v417, %v485
      %503 = vset.pattern.permute.xlu0 0
      %504 = vperm.xlu0 %503, %v341
      %v505 = vpop.permute.xlu0 %504
      %508 = vset.pattern.permute.xlu0 0
      %509 = vperm.xlu0 %508, %v342
      %v510 = vpop.permute.xlu0 %509
      %513 = vset.pattern.permute.xlu0 0
      %514 = vperm.xlu0 %513, %v343
      %v515 = vpop.permute.xlu0 %514
      %518 = vset.pattern.permute.xlu0 0
      %519 = vperm.xlu0 %518, %v344
      %v520 = vpop.permute.xlu0 %519
      %v522 = vadd.f32 %v486, %v505
      %v523 = vadd.f32 %v487, %v505
      %v524 = vadd.f32 %v488, %v505
      %v525 = vadd.f32 %v489, %v505
      %v526 = vadd.f32 %v490, %v510
      %v527 = vadd.f32 %v491, %v510
      %v528 = vadd.f32 %v492, %v510
      %v529 = vadd.f32 %v493, %v510
      %v530 = vadd.f32 %v494, %v515
      %v531 = vadd.f32 %v495, %v515
      %v532 = vadd.f32 %v496, %v515
      %v533 = vadd.f32 %v497, %v515
      %v534 = vadd.f32 %v498, %v520
      %v535 = vadd.f32 %v499, %v520
      %v536 = vadd.f32 %v500, %v520
      %v537 = vadd.f32 %v501, %v520
      %v538 = vtanh.pop %v522
      %v539 = vtanh.pop %v523
      %v540 = vtanh.pop %v524
      %v541 = vtanh.pop %v525
      %v542 = vtanh.pop %v526
      %v543 = vtanh.pop %v527
      %v544 = vtanh.pop %v528
      %v545 = vtanh.pop %v529
      %v546 = vtanh.pop %v530
      %v547 = vtanh.pop %v531
      %v548 = vtanh.pop %v532
      %v549 = vtanh.pop %v533
      %v550 = vtanh.pop %v534
      %v551 = vtanh.pop %v535
      %v552 = vtanh.pop %v536
      %v553 = vtanh.pop %v537
      %v554 = vld [vmem:[%s3] sm:$0xff]
      %v555 = vld [vmem:[%s3 + $0x8] sm:$0xff]
      %v556 = vld [vmem:[%s3 + $0x10] sm:$0xff]
      %v557 = vld [vmem:[%s3 + $0x18] sm:$0xff]
      %v558 = vld [vmem:[%s4] sm:$0xff]
      %v559 = vld [vmem:[%s4 + $0x8] sm:$0xff]
      %v560 = vld [vmem:[%s4 + $0x10] sm:$0xff]
      %v561 = vld [vmem:[%s4 + $0x18] sm:$0xff]
      %563 = vset.pattern.permute.xlu0 0
      %564 = vperm.xlu0 %563, %v558
      %v565 = vpop.permute.xlu0 %564
      %568 = vset.pattern.permute.xlu0 0
      %569 = vperm.xlu0 %568, %v559
      %v570 = vpop.permute.xlu0 %569
      %573 = vset.pattern.permute.xlu0 0
      %574 = vperm.xlu0 %573, %v560
      %v575 = vpop.permute.xlu0 %574
      %578 = vset.pattern.permute.xlu0 0
      %579 = vperm.xlu0 %578, %v561
      %v580 = vpop.permute.xlu0 %579
      %vm582 = vcmask 261120
      %v584 = vsel %vm582, %v554, 0
      %v587 = vsel %vm582, %v555, 0
      %v590 = vsel %vm582, %v556, 0
      %v593 = vsel %vm582, %v557, 0
      %595 = vmatprep.subr.mxu0 %v539
      %596 = vmatpush1.msra.mxu0 %v538
      %597 = vmatprep.subr.mxu0 %v543
      %598 = vmatpush1.msra.mxu0 %v542
      %599 = vmatprep.subr.mxu0 %v547
      %600 = vmatpush1.msra.mxu0 %v546
      %601 = vmatprep.subr.mxu0 %v551
      %602 = vmatpush1.msra.mxu0 %v550
      %603 = vmatprep.subr.mxu0 0.0
      %604 = vmatpush1.msra.mxu0 0.0
      %605 = vmatprep.subr.mxu0 0.0
      %606 = vmatpush1.msra.mxu0 0.0
      %607 = vmatprep.subr.mxu0 0.0
      %608 = vmatpush1.msra.mxu0 0.0
      %609 = vmatprep.subr.mxu0 0.0
      %610 = vmatpush1.msra.mxu0 0.0
      %611 = vmatprep.subr.mxu0 0.0
      %612 = vmatpush1.msra.mxu0 0.0
      %613 = vmatprep.subr.mxu0 0.0
      %614 = vmatpush1.msra.mxu0 0.0
      %615 = vmatprep.subr.mxu0 0.0
      %616 = vmatpush1.msra.mxu0 0.0
      %617 = vmatprep.subr.mxu0 0.0
      %618 = vmatpush1.msra.mxu0 0.0
      %619 = vmatprep.subr.mxu0 0.0
      %620 = vmatpush1.msra.mxu0 0.0
      %621 = vmatprep.subr.mxu0 0.0
      %622 = vmatpush1.msra.mxu0 0.0
      %623 = vmatprep.subr.mxu0 0.0
      %624 = vmatpush1.msra.mxu0 0.0
      %625 = vmatprep.subr.mxu0 0.0
      %626 = vmatpush1.msra.mxu0 0.0
      %627 = vmatprep.subr.mxu0 0.0
      %628 = vmatpush1.msra.mxu0 0.0
      %629 = vmatprep.subr.mxu0 0.0
      %630 = vmatpush1.msra.mxu0 0.0
      %631 = vmatprep.subr.mxu0 0.0
      %632 = vmatpush1.msra.mxu0 0.0
      %633 = vmatprep.subr.mxu0 0.0
      %634 = vmatpush1.msra.mxu0 0.0
      %635 = vmatprep.subr.mxu0 0.0
      %636 = vmatpush1.msra.mxu0 0.0
      %637 = vmatprep.subr.mxu0 0.0
      %638 = vmatpush1.msra.mxu0 0.0
      %639 = vmatprep.subr.mxu0 0.0
      %640 = vmatpush1.msra.mxu0 0.0
      %641 = vmatprep.subr.mxu0 0.0
      %642 = vmatpush1.msra.mxu0 0.0
      %643 = vmatprep.subr.mxu0 0.0
      %644 = vmatpush1.msra.mxu0 0.0
      %645 = vmatprep.subr.mxu0 0.0
      %646 = vmatpush1.msra.mxu0 0.0
      %647 = vmatprep.subr.mxu0 0.0
      %648 = vmatpush1.msra.mxu0 0.0
      %649 = vmatprep.subr.mxu0 0.0
      %650 = vmatpush1.msra.mxu0 0.0
      %651 = vmatprep.subr.mxu0 0.0
      %652 = vmatpush1.msra.mxu0 0.0
      %653 = vmatprep.subr.mxu0 0.0
      %654 = vmatpush1.msra.mxu0 0.0
      %655 = vmatprep.subr.mxu0 0.0
      %656 = vmatpush1.msra.mxu0 0.0
      %657 = vmatprep.subr.mxu0 0.0
      %658 = vmatpush1.msra.mxu0 0.0
      %659 = vmatprep.mubr.f32.mxu0 0.0
      %660 = vmatmul.mubr.f32.gmra.mrb[0].mxu0 %v584
      %v661 = vpop.f32.mrb[0].mxu0
      %v662 = vadd.f32 %v565, %v661
      %v663 = vpop.f32.mrb[0].mxu0
      %v664 = vadd.f32 %v565, %v663
      %665 = vmatprep.mubr.f32.mxu0 0.0
      %666 = vmatmul.mubr.f32.gmra.mrb[0].mxu0 %v587
      %v667 = vpop.f32.mrb[0].mxu0
      %v668 = vadd.f32 %v570, %v667
      %v669 = vpop.f32.mrb[0].mxu0
      %v670 = vadd.f32 %v570, %v669
      %671 = vmatprep.mubr.f32.mxu0 0.0
      %672 = vmatmul.mubr.f32.gmra.mrb[0].mxu0 %v590
      %v673 = vpop.f32.mrb[0].mxu0
      %v674 = vadd.f32 %v575, %v673
      %v675 = vpop.f32.mrb[0].mxu0
      %v676 = vadd.f32 %v575, %v675
      %677 = vmatprep.mubr.f32.mxu0 0.0
      %678 = vmatmul.mubr.f32.gmra.mrb[0].mxu0 %v593
      %v679 = vpop.f32.mrb[0].mxu0
      %v680 = vadd.f32 %v580, %v679
      %v681 = vpop.f32.mrb[0].mxu0
      %v682 = vadd.f32 %v580, %v681
      %683 = vdwg.mxu0
      %684 = vmatprep.subr.mxu0 %v541
      %685 = vmatpush1.msra.mxu0 %v540
      %686 = vmatprep.subr.mxu0 %v545
      %687 = vmatpush1.msra.mxu0 %v544
      %688 = vmatprep.subr.mxu0 %v549
      %689 = vmatpush1.msra.mxu0 %v548
      %690 = vmatprep.subr.mxu0 %v553
      %691 = vmatpush1.msra.mxu0 %v552
      %692 = vmatprep.subr.mxu0 0.0
      %693 = vmatpush1.msra.mxu0 0.0
      %694 = vmatprep.subr.mxu0 0.0
      %695 = vmatpush1.msra.mxu0 0.0
      %696 = vmatprep.subr.mxu0 0.0
      %697 = vmatpush1.msra.mxu0 0.0
      %698 = vmatprep.subr.mxu0 0.0
      %699 = vmatpush1.msra.mxu0 0.0
      %700 = vmatprep.subr.mxu0 0.0
      %701 = vmatpush1.msra.mxu0 0.0
      %702 = vmatprep.subr.mxu0 0.0
      %703 = vmatpush1.msra.mxu0 0.0
      %704 = vmatprep.subr.mxu0 0.0
      %705 = vmatpush1.msra.mxu0 0.0
      %706 = vmatprep.subr.mxu0 0.0
      %707 = vmatpush1.msra.mxu0 0.0
      %708 = vmatprep.subr.mxu0 0.0
      %709 = vmatpush1.msra.mxu0 0.0
      %710 = vmatprep.subr.mxu0 0.0
      %711 = vmatpush1.msra.mxu0 0.0
      %712 = vmatprep.subr.mxu0 0.0
      %713 = vmatpush1.msra.mxu0 0.0
      %714 = vmatprep.subr.mxu0 0.0
      %715 = vmatpush1.msra.mxu0 0.0
      %716 = vmatprep.subr.mxu0 0.0
      %717 = vmatpush1.msra.mxu0 0.0
      %718 = vmatprep.subr.mxu0 0.0
      %719 = vmatpush1.msra.mxu0 0.0
      %720 = vmatprep.subr.mxu0 0.0
      %721 = vmatpush1.msra.mxu0 0.0
      %722 = vmatprep.subr.mxu0 0.0
      %723 = vmatpush1.msra.mxu0 0.0
      %724 = vmatprep.subr.mxu0 0.0
      %725 = vmatpush1.msra.mxu0 0.0
      %726 = vmatprep.subr.mxu0 0.0
      %727 = vmatpush1.msra.mxu0 0.0
      %728 = vmatprep.subr.mxu0 0.0
      %729 = vmatpush1.msra.mxu0 0.0
      %730 = vmatprep.subr.mxu0 0.0
      %731 = vmatpush1.msra.mxu0 0.0
      %732 = vmatprep.subr.mxu0 0.0
      %733 = vmatpush1.msra.mxu0 0.0
      %734 = vmatprep.subr.mxu0 0.0
      %735 = vmatpush1.msra.mxu0 0.0
      %736 = vmatprep.subr.mxu0 0.0
      %737 = vmatpush1.msra.mxu0 0.0
      %738 = vmatprep.subr.mxu0 0.0
      %739 = vmatpush1.msra.mxu0 0.0
      %740 = vmatprep.subr.mxu0 0.0
      %741 = vmatpush1.msra.mxu0 0.0
      %742 = vmatprep.subr.mxu0 0.0
      %743 = vmatpush1.msra.mxu0 0.0
      %744 = vmatprep.subr.mxu0 0.0
      %745 = vmatpush1.msra.mxu0 0.0
      %746 = vmatprep.subr.mxu0 0.0
      %747 = vmatpush1.msra.mxu0 0.0
      %748 = vmatprep.mubr.f32.mxu0 0.0
      %749 = vmatmul.mubr.f32.gmra.mrb[0].mxu0 %v584
      %v750 = vpop.f32.mrb[0].mxu0
      %v751 = vadd.f32 %v565, %v750
      %v752 = vpop.f32.mrb[0].mxu0
      %v753 = vadd.f32 %v565, %v752
      %754 = vmatprep.mubr.f32.mxu0 0.0
      %755 = vmatmul.mubr.f32.gmra.mrb[0].mxu0 %v587
      %v756 = vpop.f32.mrb[0].mxu0
      %v757 = vadd.f32 %v570, %v756
      %v758 = vpop.f32.mrb[0].mxu0
      %v759 = vadd.f32 %v570, %v758
      %760 = vmatprep.mubr.f32.mxu0 0.0
      %761 = vmatmul.mubr.f32.gmra.mrb[0].mxu0 %v590
      %v762 = vpop.f32.mrb[0].mxu0
      %v763 = vadd.f32 %v575, %v762
      %v764 = vpop.f32.mrb[0].mxu0
      %v765 = vadd.f32 %v575, %v764
      %766 = vmatprep.mubr.f32.mxu0 0.0
      %767 = vmatmul.mubr.f32.gmra.mrb[0].mxu0 %v593
      %v768 = vpop.f32.mrb[0].mxu0
      %v769 = vadd.f32 %v580, %v768
      %v770 = vpop.f32.mrb[0].mxu0
      %v771 = vadd.f32 %v580, %v770
      %772 = vdwg.mxu0
      %v773 = vtanh.pop %v662
      %v774 = vtanh.pop %v664
      %v775 = vtanh.pop %v751
      %v776 = vtanh.pop %v753
      %v777 = vtanh.pop %v668
      %v778 = vtanh.pop %v670
      %v779 = vtanh.pop %v757
      %v780 = vtanh.pop %v759
      %v781 = vtanh.pop %v674
      %v782 = vtanh.pop %v676
      %v783 = vtanh.pop %v763
      %v784 = vtanh.pop %v765
      %v785 = vtanh.pop %v680
      %v786 = vtanh.pop %v682
      %v787 = vtanh.pop %v769
      %v788 = vtanh.pop %v771
      %v789 = vld [vmem:[%s5] sm:$0xff]
      %v790 = vld [vmem:[%s5 + $0x8] sm:$0xff]
      %v791 = vld [vmem:[%s5 + $0x10] sm:$0xff]
      %v792 = vld [vmem:[%s5 + $0x18] sm:$0xff]
      %v793 = vld [vmem:[%s6] sm:$0xff]
      %v794 = vld [vmem:[%s6 + $0x8] sm:$0xff]
      %v795 = vld [vmem:[%s6 + $0x10] sm:$0xff]
      %v796 = vld [vmem:[%s6 + $0x18] sm:$0xff]
      %798 = vset.pattern.permute.xlu0 0
      %799 = vperm.xlu0 %798, %v793
      %v800 = vpop.permute.xlu0 %799
      %803 = vset.pattern.permute.xlu0 0
      %804 = vperm.xlu0 %803, %v794
      %v805 = vpop.permute.xlu0 %804
      %808 = vset.pattern.permute.xlu0 0
      %809 = vperm.xlu0 %808, %v795
      %v810 = vpop.permute.xlu0 %809
      %813 = vset.pattern.permute.xlu0 0
      %814 = vperm.xlu0 %813, %v796
      %v815 = vpop.permute.xlu0 %814
      %v818 = vsel %vm582, %v789, 0
      %v821 = vsel %vm582, %v790, 0
      %v824 = vsel %vm582, %v791, 0
      %v827 = vsel %vm582, %v792, 0
      %829 = vmatprep.subr.mxu0 %v774
      %830 = vmatpush1.msra.mxu0 %v773
      %831 = vmatprep.subr.mxu0 %v778
      %832 = vmatpush1.msra.mxu0 %v777
      %833 = vmatprep.subr.mxu0 %v782
      %834 = vmatpush1.msra.mxu0 %v781
      %835 = vmatprep.subr.mxu0 %v786
      %836 = vmatpush1.msra.mxu0 %v785
      %837 = vmatprep.subr.mxu0 0.0
      %838 = vmatpush1.msra.mxu0 0.0
      %839 = vmatprep.subr.mxu0 0.0
      %840 = vmatpush1.msra.mxu0 0.0
      %841 = vmatprep.subr.mxu0 0.0
      %842 = vmatpush1.msra.mxu0 0.0
      %843 = vmatprep.subr.mxu0 0.0
      %844 = vmatpush1.msra.mxu0 0.0
      %845 = vmatprep.subr.mxu0 0.0
      %846 = vmatpush1.msra.mxu0 0.0
      %847 = vmatprep.subr.mxu0 0.0
      %848 = vmatpush1.msra.mxu0 0.0
      %849 = vmatprep.subr.mxu0 0.0
      %850 = vmatpush1.msra.mxu0 0.0
      %851 = vmatprep.subr.mxu0 0.0
      %852 = vmatpush1.msra.mxu0 0.0
      %853 = vmatprep.subr.mxu0 0.0
      %854 = vmatpush1.msra.mxu0 0.0
      %855 = vmatprep.subr.mxu0 0.0
      %856 = vmatpush1.msra.mxu0 0.0
      %857 = vmatprep.subr.mxu0 0.0
      %858 = vmatpush1.msra.mxu0 0.0
      %859 = vmatprep.subr.mxu0 0.0
      %860 = vmatpush1.msra.mxu0 0.0
      %861 = vmatprep.subr.mxu0 0.0
      %862 = vmatpush1.msra.mxu0 0.0
      %863 = vmatprep.subr.mxu0 0.0
      %864 = vmatpush1.msra.mxu0 0.0
      %865 = vmatprep.subr.mxu0 0.0
      %866 = vmatpush1.msra.mxu0 0.0
      %867 = vmatprep.subr.mxu0 0.0
      %868 = vmatpush1.msra.mxu0 0.0
      %869 = vmatprep.subr.mxu0 0.0
      %870 = vmatpush1.msra.mxu0 0.0
      %871 = vmatprep.subr.mxu0 0.0
      %872 = vmatpush1.msra.mxu0 0.0
      %873 = vmatprep.subr.mxu0 0.0
      %874 = vmatpush1.msra.mxu0 0.0
      %875 = vmatprep.subr.mxu0 0.0
      %876 = vmatpush1.msra.mxu0 0.0
      %877 = vmatprep.subr.mxu0 0.0
      %878 = vmatpush1.msra.mxu0 0.0
      %879 = vmatprep.subr.mxu0 0.0
      %880 = vmatpush1.msra.mxu0 0.0
      %881 = vmatprep.subr.mxu0 0.0
      %882 = vmatpush1.msra.mxu0 0.0
      %883 = vmatprep.subr.mxu0 0.0
      %884 = vmatpush1.msra.mxu0 0.0
      %885 = vmatprep.subr.mxu0 0.0
      %886 = vmatpush1.msra.mxu0 0.0
      %887 = vmatprep.subr.mxu0 0.0
      %888 = vmatpush1.msra.mxu0 0.0
      %889 = vmatprep.subr.mxu0 0.0
      %890 = vmatpush1.msra.mxu0 0.0
      %891 = vmatprep.subr.mxu0 0.0
      %892 = vmatpush1.msra.mxu0 0.0
      %893 = vmatprep.mubr.f32.mxu0 0.0
      %894 = vmatmul.mubr.f32.gmra.mrb[0].mxu0 %v818
      %v895 = vpop.f32.mrb[0].mxu0
      %v896 = vadd.f32 %v800, %v895
      %v897 = vpop.f32.mrb[0].mxu0
      %v898 = vadd.f32 %v800, %v897
      %899 = vmatprep.mubr.f32.mxu0 0.0
      %900 = vmatmul.mubr.f32.gmra.mrb[0].mxu0 %v821
      %v901 = vpop.f32.mrb[0].mxu0
      %v902 = vadd.f32 %v805, %v901
      %v903 = vpop.f32.mrb[0].mxu0
      %v904 = vadd.f32 %v805, %v903
      %905 = vmatprep.mubr.f32.mxu0 0.0
      %906 = vmatmul.mubr.f32.gmra.mrb[0].mxu0 %v824
      %v907 = vpop.f32.mrb[0].mxu0
      %v908 = vadd.f32 %v810, %v907
      %v909 = vpop.f32.mrb[0].mxu0
      %v910 = vadd.f32 %v810, %v909
      %911 = vmatprep.mubr.f32.mxu0 0.0
      %912 = vmatmul.mubr.f32.gmra.mrb[0].mxu0 %v827
      %v913 = vpop.f32.mrb[0].mxu0
      %v914 = vadd.f32 %v815, %v913
      %v915 = vpop.f32.mrb[0].mxu0
      %v916 = vadd.f32 %v815, %v915
      %917 = vdwg.mxu0
      %918 = vmatprep.subr.mxu0 %v776
      %919 = vmatpush1.msra.mxu0 %v775
      %920 = vmatprep.subr.mxu0 %v780
      %921 = vmatpush1.msra.mxu0 %v779
      %922 = vmatprep.subr.mxu0 %v784
      %923 = vmatpush1.msra.mxu0 %v783
      %924 = vmatprep.subr.mxu0 %v788
      %925 = vmatpush1.msra.mxu0 %v787
      %926 = vmatprep.subr.mxu0 0.0
      %927 = vmatpush1.msra.mxu0 0.0
      %928 = vmatprep.subr.mxu0 0.0
      %929 = vmatpush1.msra.mxu0 0.0
      %930 = vmatprep.subr.mxu0 0.0
      %931 = vmatpush1.msra.mxu0 0.0
      %932 = vmatprep.subr.mxu0 0.0
      %933 = vmatpush1.msra.mxu0 0.0
      %934 = vmatprep.subr.mxu0 0.0
      %935 = vmatpush1.msra.mxu0 0.0
      %936 = vmatprep.subr.mxu0 0.0
      %937 = vmatpush1.msra.mxu0 0.0
      %938 = vmatprep.subr.mxu0 0.0
      %939 = vmatpush1.msra.mxu0 0.0
      %940 = vmatprep.subr.mxu0 0.0
      %941 = vmatpush1.msra.mxu0 0.0
      %942 = vmatprep.subr.mxu0 0.0
      %943 = vmatpush1.msra.mxu0 0.0
      %944 = vmatprep.subr.mxu0 0.0
      %945 = vmatpush1.msra.mxu0 0.0
      %946 = vmatprep.subr.mxu0 0.0
      %947 = vmatpush1.msra.mxu0 0.0
      %948 = vmatprep.subr.mxu0 0.0
      %949 = vmatpush1.msra.mxu0 0.0
      %950 = vmatprep.subr.mxu0 0.0
      %951 = vmatpush1.msra.mxu0 0.0
      %952 = vmatprep.subr.mxu0 0.0
      %953 = vmatpush1.msra.mxu0 0.0
      %954 = vmatprep.subr.mxu0 0.0
      %955 = vmatpush1.msra.mxu0 0.0
      %956 = vmatprep.subr.mxu0 0.0
      %957 = vmatpush1.msra.mxu0 0.0
      %958 = vmatprep.subr.mxu0 0.0
      %959 = vmatpush1.msra.mxu0 0.0
      %960 = vmatprep.subr.mxu0 0.0
      %961 = vmatpush1.msra.mxu0 0.0
      %962 = vmatprep.subr.mxu0 0.0
      %963 = vmatpush1.msra.mxu0 0.0
      %964 = vmatprep.subr.mxu0 0.0
      %965 = vmatpush1.msra.mxu0 0.0
      %966 = vmatprep.subr.mxu0 0.0
      %967 = vmatpush1.msra.mxu0 0.0
      %968 = vmatprep.subr.mxu0 0.0
      %969 = vmatpush1.msra.mxu0 0.0
      %970 = vmatprep.subr.mxu0 0.0
      %971 = vmatpush1.msra.mxu0 0.0
      %972 = vmatprep.subr.mxu0 0.0
      %973 = vmatpush1.msra.mxu0 0.0
      %974 = vmatprep.subr.mxu0 0.0
      %975 = vmatpush1.msra.mxu0 0.0
      %976 = vmatprep.subr.mxu0 0.0
      %977 = vmatpush1.msra.mxu0 0.0
      %978 = vmatprep.subr.mxu0 0.0
      %979 = vmatpush1.msra.mxu0 0.0
      %980 = vmatprep.subr.mxu0 0.0
      %981 = vmatpush1.msra.mxu0 0.0
      %982 = vmatprep.mubr.f32.mxu0 0.0
      %983 = vmatmul.mubr.f32.gmra.mrb[0].mxu0 %v818
      %v984 = vpop.f32.mrb[0].mxu0
      %v985 = vadd.f32 %v800, %v984
      %v986 = vpop.f32.mrb[0].mxu0
      %v987 = vadd.f32 %v800, %v986
      %988 = vmatprep.mubr.f32.mxu0 0.0
      %989 = vmatmul.mubr.f32.gmra.mrb[0].mxu0 %v821
      %v990 = vpop.f32.mrb[0].mxu0
      %v991 = vadd.f32 %v805, %v990
      %v992 = vpop.f32.mrb[0].mxu0
      %v993 = vadd.f32 %v805, %v992
      %994 = vmatprep.mubr.f32.mxu0 0.0
      %995 = vmatmul.mubr.f32.gmra.mrb[0].mxu0 %v824
      %v996 = vpop.f32.mrb[0].mxu0
      %v997 = vadd.f32 %v810, %v996
      %v998 = vpop.f32.mrb[0].mxu0
      %v999 = vadd.f32 %v810, %v998
      %1000 = vmatprep.mubr.f32.mxu0 0.0
      %1001 = vmatmul.mubr.f32.gmra.mrb[0].mxu0 %v827
      %v1002 = vpop.f32.mrb[0].mxu0
      %v1003 = vadd.f32 %v815, %v1002
      %v1004 = vpop.f32.mrb[0].mxu0
      %v1005 = vadd.f32 %v815, %v1004
      %1006 = vdwg.mxu0
      %v1007 = vtanh.pop %v896
      %v1008 = vtanh.pop %v898
      %v1009 = vtanh.pop %v985
      %v1010 = vtanh.pop %v987
      %v1011 = vtanh.pop %v902
      %v1012 = vtanh.pop %v904
      %v1013 = vtanh.pop %v991
      %v1014 = vtanh.pop %v993
      %v1015 = vtanh.pop %v908
      %v1016 = vtanh.pop %v910
      %v1017 = vtanh.pop %v997
      %v1018 = vtanh.pop %v999
      %v1019 = vtanh.pop %v914
      %v1020 = vtanh.pop %v916
      %v1021 = vtanh.pop %v1003
      %v1022 = vtanh.pop %v1005
      %v1023 = vld [vmem:[%s7] sm:$0x1]
      %v1024 = vld [vmem:[#allocation2] sm:$0x1]
      %1026 = vset.pattern.permute.xlu0 0
      %1027 = vperm.xlu0 %1026, %v1024
      %v1028 = vpop.permute.xlu0 %1027
      %v1030 = vlaneseq
      %v1031 = vshrl.u32 %v1030, 7
      %v1032 = vsub.s32 0, %v1031
      %v1033 = vrot.slane %v1028, %v1032
      %v1035 = vsel %vm582, %v1023, 0
      %1037 = vmatprep.subr.mxu0 %v1008
      %1038 = vmatpush1.msra.mxu0 %v1007
      %1039 = vmatprep.subr.mxu0 %v1012
      %1040 = vmatpush1.msra.mxu0 %v1011
      %1041 = vmatprep.subr.mxu0 %v1016
      %1042 = vmatpush1.msra.mxu0 %v1015
      %1043 = vmatprep.subr.mxu0 %v1020
      %1044 = vmatpush1.msra.mxu0 %v1019
      %1045 = vmatprep.subr.mxu0 0.0
      %1046 = vmatpush1.msra.mxu0 0.0
      %1047 = vmatprep.subr.mxu0 0.0
      %1048 = vmatpush1.msra.mxu0 0.0
      %1049 = vmatprep.subr.mxu0 0.0
      %1050 = vmatpush1.msra.mxu0 0.0
      %1051 = vmatprep.subr.mxu0 0.0
      %1052 = vmatpush1.msra.mxu0 0.0
      %1053 = vmatprep.subr.mxu0 0.0
      %1054 = vmatpush1.msra.mxu0 0.0
      %1055 = vmatprep.subr.mxu0 0.0
      %1056 = vmatpush1.msra.mxu0 0.0
      %1057 = vmatprep.subr.mxu0 0.0
      %1058 = vmatpush1.msra.mxu0 0.0
      %1059 = vmatprep.subr.mxu0 0.0
      %1060 = vmatpush1.msra.mxu0 0.0
      %1061 = vmatprep.subr.mxu0 0.0
      %1062 = vmatpush1.msra.mxu0 0.0
      %1063 = vmatprep.subr.mxu0 0.0
      %1064 = vmatpush1.msra.mxu0 0.0
      %1065 = vmatprep.subr.mxu0 0.0
      %1066 = vmatpush1.msra.mxu0 0.0
      %1067 = vmatprep.subr.mxu0 0.0
      %1068 = vmatpush1.msra.mxu0 0.0
      %1069 = vmatprep.subr.mxu0 0.0
      %1070 = vmatpush1.msra.mxu0 0.0
      %1071 = vmatprep.subr.mxu0 0.0
      %1072 = vmatpush1.msra.mxu0 0.0
      %1073 = vmatprep.subr.mxu0 0.0
      %1074 = vmatpush1.msra.mxu0 0.0
      %1075 = vmatprep.subr.mxu0 0.0
      %1076 = vmatpush1.msra.mxu0 0.0
      %1077 = vmatprep.subr.mxu0 0.0
      %1078 = vmatpush1.msra.mxu0 0.0
      %1079 = vmatprep.subr.mxu0 0.0
      %1080 = vmatpush1.msra.mxu0 0.0
      %1081 = vmatprep.subr.mxu0 0.0
      %1082 = vmatpush1.msra.mxu0 0.0
      %1083 = vmatprep.subr.mxu0 0.0
      %1084 = vmatpush1.msra.mxu0 0.0
      %1085 = vmatprep.subr.mxu0 0.0
      %1086 = vmatpush1.msra.mxu0 0.0
      %1087 = vmatprep.subr.mxu0 0.0
      %1088 = vmatpush1.msra.mxu0 0.0
      %1089 = vmatprep.subr.mxu0 0.0
      %1090 = vmatpush1.msra.mxu0 0.0
      %1091 = vmatprep.subr.mxu0 0.0
      %1092 = vmatpush1.msra.mxu0 0.0
      %1093 = vmatprep.subr.mxu0 0.0
      %1094 = vmatpush1.msra.mxu0 0.0
      %1095 = vmatprep.subr.mxu0 0.0
      %1096 = vmatpush1.msra.mxu0 0.0
      %1097 = vmatprep.subr.mxu0 0.0
      %1098 = vmatpush1.msra.mxu0 0.0
      %1099 = vmatprep.subr.mxu0 0.0
      %1100 = vmatpush1.msra.mxu0 0.0
      %1101 = vmatprep.mubr.f32.mxu0 0.0
      %1102 = vmatmul.mubr.f32.gmra.mrb[0].mxu0 %v1035
      %v1103 = vpop.f32.mrb[0].mxu0
      %v1104 = vadd.f32 %v1033, %v1103
      %v1105 = vpop.f32.mrb[0].mxu0
      %v1106 = vadd.f32 %v1033, %v1105
      %1107 = vdwg.mxu0
      %1108 = vmatprep.subr.mxu0 %v1010
      %1109 = vmatpush1.msra.mxu0 %v1009
      %1110 = vmatprep.subr.mxu0 %v1014
      %1111 = vmatpush1.msra.mxu0 %v1013
      %1112 = vmatprep.subr.mxu0 %v1018
      %1113 = vmatpush1.msra.mxu0 %v1017
      %1114 = vmatprep.subr.mxu0 %v1022
      %1115 = vmatpush1.msra.mxu0 %v1021
      %1116 = vmatprep.subr.mxu0 0.0
      %1117 = vmatpush1.msra.mxu0 0.0
      %1118 = vmatprep.subr.mxu0 0.0
      %1119 = vmatpush1.msra.mxu0 0.0
      %1120 = vmatprep.subr.mxu0 0.0
      %1121 = vmatpush1.msra.mxu0 0.0
      %1122 = vmatprep.subr.mxu0 0.0
      %1123 = vmatpush1.msra.mxu0 0.0
      %1124 = vmatprep.subr.mxu0 0.0
      %1125 = vmatpush1.msra.mxu0 0.0
      %1126 = vmatprep.subr.mxu0 0.0
      %1127 = vmatpush1.msra.mxu0 0.0
      %1128 = vmatprep.subr.mxu0 0.0
      %1129 = vmatpush1.msra.mxu0 0.0
      %1130 = vmatprep.subr.mxu0 0.0
      %1131 = vmatpush1.msra.mxu0 0.0
      %1132 = vmatprep.subr.mxu0 0.0
      %1133 = vmatpush1.msra.mxu0 0.0
      %1134 = vmatprep.subr.mxu0 0.0
      %1135 = vmatpush1.msra.mxu0 0.0
      %1136 = vmatprep.subr.mxu0 0.0
      %1137 = vmatpush1.msra.mxu0 0.0
      %1138 = vmatprep.subr.mxu0 0.0
      %1139 = vmatpush1.msra.mxu0 0.0
      %1140 = vmatprep.subr.mxu0 0.0
      %1141 = vmatpush1.msra.mxu0 0.0
      %1142 = vmatprep.subr.mxu0 0.0
      %1143 = vmatpush1.msra.mxu0 0.0
      %1144 = vmatprep.subr.mxu0 0.0
      %1145 = vmatpush1.msra.mxu0 0.0
      %1146 = vmatprep.subr.mxu0 0.0
      %1147 = vmatpush1.msra.mxu0 0.0
      %1148 = vmatprep.subr.mxu0 0.0
      %1149 = vmatpush1.msra.mxu0 0.0
      %1150 = vmatprep.subr.mxu0 0.0
      %1151 = vmatpush1.msra.mxu0 0.0
      %1152 = vmatprep.subr.mxu0 0.0
      %1153 = vmatpush1.msra.mxu0 0.0
      %1154 = vmatprep.subr.mxu0 0.0
      %1155 = vmatpush1.msra.mxu0 0.0
      %1156 = vmatprep.subr.mxu0 0.0
      %1157 = vmatpush1.msra.mxu0 0.0
      %1158 = vmatprep.subr.mxu0 0.0
      %1159 = vmatpush1.msra.mxu0 0.0
      %1160 = vmatprep.subr.mxu0 0.0
      %1161 = vmatpush1.msra.mxu0 0.0
      %1162 = vmatprep.subr.mxu0 0.0
      %1163 = vmatpush1.msra.mxu0 0.0
      %1164 = vmatprep.subr.mxu0 0.0
      %1165 = vmatpush1.msra.mxu0 0.0
      %1166 = vmatprep.subr.mxu0 0.0
      %1167 = vmatpush1.msra.mxu0 0.0
      %1168 = vmatprep.subr.mxu0 0.0
      %1169 = vmatpush1.msra.mxu0 0.0
      %1170 = vmatprep.subr.mxu0 0.0
      %1171 = vmatpush1.msra.mxu0 0.0
      %1172 = vmatprep.mubr.f32.mxu0 0.0
      %1173 = vmatmul.mubr.f32.gmra.mrb[0].mxu0 %v1035
      %v1174 = vpop.f32.mrb[0].mxu0
      %v1175 = vadd.f32 %v1033, %v1174
      %v1176 = vpop.f32.mrb[0].mxu0
      %v1177 = vadd.f32 %v1033, %v1176
      %1178 = vdwg.mxu0
      %v1183 = vcombine.low %v1104, %v1106
      %v1184 = vcombine.low %v1175, %v1177
      %v1186 = vunpack.c.l.s4 1966171168
      %v1187 = vunpack.c.0.s8 %v1186
      %v1188 = vlaneseq
      %v1189 = vshrl.u32 %v1188, 7
      %v1190 = vsub.s32 %v1187, %v1189
      %v1191 = vrot.slane %v1183, %v1190
      %v1193 = vunpack.c.l.s4 1966171168
      %v1194 = vunpack.c.0.s8 %v1193
      %v1195 = vlaneseq
      %v1196 = vshrl.u32 %v1195, 7
      %v1197 = vsub.s32 %v1194, %v1196
      %v1198 = vrot.slane %v1184, %v1197
      %v1199 = vcombine.low %v1191, %v1198
      %v1201 = vunpack.c.l.s4 1966171168
      %v1202 = vunpack.c.0.s8 %v1201
      %v1203 = vlaneseq
      %v1204 = vshrl.u32 %v1203, 7
      %v1205 = vsub.s32 %v1202, %v1204
      %v1206 = vrot.slane %v1199, %v1205
      %v1208 = vlaneseq
      %vm1209 = vcmp.ge.s32.totalorder %v1208, 0
      %vm1210 = vcmp.lt.s32.totalorder %v1208, 512
      %vm1211 = vmand %vm1209, %vm1210
      %1212 = vst.msk [vmem:[%s334] sm:$0xf] %vm1211, %v1206
      %s1213 = smul.u32 4, %s22
      %p1214 = scmp.lt.s32.totalorder %s1213, 7
      %s1215 = scalar_select %p1214, %s1213, 7
      %s1216 = scalar_lea.vmem %s9, %s1215
      // Predicated region
      $region57: #{fcn_forward.1} parent=55 // pred_check
        %p1217 = pneg %p234
      $region58: #{fcn_forward.1} parent=55 // pred_check_branch
        %1219 = sbr.rel (%p1217) target = $region60
      $region59: #{fcn_forward.1} parent=55 // pred_region
        %s1220 = smul.u32 4, %s22
      $region60: #{fcn_forward.1} parent=55 // pred_fallthru
        _
    $region56: #{fcn_forward.1} parent=5 // pred_fallthru
      _
    %p1221 = scmp.le.s32.totalorder 2, %s17
    // Predicated region
    $region61: #{fcn_forward.1} parent=5 // pred_check
      %p1222 = pneg %p1221
    $region62: #{fcn_forward.1} parent=5 // pred_check_branch
      %1224 = sbr.rel (%p1222) target = $region64
    $region63: #{fcn_forward.1} parent=5 // pred_region
      %s1225 = ssub.s32 %s17, 2
      // Predicated region
      $region65: #{fcn_forward.1} parent=63 // pred_check
        %p1226 = pneg %p240
      $region66: #{fcn_forward.1} parent=63 // pred_check_branch
        %1228 = sbr.rel (%p1226) target = $region68
      $region67: #{fcn_forward.1} parent=63 // pred_region
        %s1229 = smul.u32 4, %s23
        %p1230 = scmp.lt.s32.totalorder %s1229, 7
        %s1231 = scalar_select %p1230, %s1229, 7
        %s1232 = scalar_lea.vmem %s9, %s1231
      $region68: #{fcn_forward.1} parent=63 // pred_fallthru
        _
    $region64: #{fcn_forward.1} parent=5 // pred_fallthru
      _
  $region6: #{fcn_forward.1} parent=0 // loop_footer
    %s21 = sadd.s32 1, %s17
  $region7: #{fcn_forward.1} parent=0 // loop_footer_branch
    %16 = sbr.rel target = $region3
  $region8: #{fcn_forward.1} parent=0 // loop_exit
    _

</llo_original>
